<compile_context>
chip_gen: v6e
topology: v6e:2x2x1
jax: 0.10.0
libtpu: 0.0.40
codegen_flags: <defaults>
</compile_context>

<pallas_src>
import functools

import jax
import jax.numpy as jnp
from jax import lax
from jax.experimental import pallas as pl
from jax.experimental.pallas import tpu as pltpu


def _round_up(x, m):
    return (x + m - 1) // m * m


def _softmax_rows(scores, n_keys):
    """f32 numerically-stable softmax over the last axis, masking padded keys."""
    if scores.shape[-1] != n_keys:
        key_idx = lax.broadcasted_iota(jnp.int32, scores.shape, scores.ndim - 1)
        scores = jnp.where(key_idx < n_keys, scores, -1e30)
    m = jnp.max(scores, axis=-1, keepdims=True)
    e = jnp.exp(scores - m)
    denom = jnp.sum(e, axis=-1, keepdims=True)
    return e * pl.reciprocal(denom, approx=True)


def _attn_kernel_general(de_ref, en_ref, w_ref, out_ref, *, n_keys):
    """de_ref: (Bt, Tq, H)  en_ref: (Bt, Lk, H)  w_ref: (H, H)  out_ref: (Bt, Tq, Lk)."""
    de = de_ref[...].astype(jnp.bfloat16)
    en = en_ref[...].astype(jnp.bfloat16)
    w = w_ref[...].astype(jnp.bfloat16)        # nn.Linear weight (out_features, in_features)

    bt, tq, h = de.shape
    # scores = de @ W @ en^T  ==  de @ (en @ W^T)^T  (PyTorch 'general').
    # Flatten batch*query rows so the MXU sees one tall LHS instead of Bt tiny ones.
    de_w = jnp.dot(de.reshape(bt * tq, h), w,
                   preferred_element_type=jnp.float32)            # (Bt*Tq, H) f32 acc
    de_w = de_w.reshape(bt, tq, h).astype(jnp.bfloat16)

    # Contract against the un-transposed en tile (batched, contraction on H).
    scores = lax.dot_general(
        de_w, en,
        dimension_numbers=(((2,), (2,)), ((0,), (0,))),
        preferred_element_type=jnp.float32)                        # (Bt, Tq, Lk) f32

    out_ref[...] = _softmax_rows(scores, n_keys).astype(out_ref.dtype)


def _attn_kernel_dot(de_ref, en_ref, out_ref, *, n_keys):
    de = de_ref[...].astype(jnp.bfloat16)
    en = en_ref[...].astype(jnp.bfloat16)
    scores = lax.dot_general(
        de, en,
        dimension_numbers=(((2,), (2,)), ((0,), (0,))),
        preferred_element_type=jnp.float32)                        # (Bt, Tq, Lk) f32
    out_ref[...] = _softmax_rows(scores, n_keys).astype(out_ref.dtype)


@functools.partial(jax.jit, static_argnames=("method",))
def attn_forward(traj_de, traj_en, attn_weight=None, *, method="general"):
    """Pallas equivalent of Attn.forward.

    traj_de : (B, L_de, H)   decoder sequence
    traj_en : (B, L_en, H)   encoder sequence
    attn_weight : (H, H)     nn.Linear weight (only for method == 'general')
    returns : (B, L_de, L_en) float32 attention weights (softmax over last axis)
    """
    if method not in ("general", "dot"):
        raise ValueError(f"unknown method: {method}")
    if method == "general" and attn_weight is None:
        raise ValueError("method='general' requires attn_weight (the nn.Linear weight)")

    B, L_de, H = traj_de.shape
    Be, L_en, He = traj_en.shape
    assert Be == B and He == H, "batch / hidden mismatch between traj_de and traj_en"

    # ---- tiling ------------------------------------------------------------
    # Keys padded to a multiple of 128 -> lane-dense scores / output stores.
    Lk = _round_up(L_en, 128)
    # Query tile: sublane-aligned, capped so long sequences keep blocks in VMEM.
    Tq = min(_round_up(L_de, 8), 256)
    L_de_pad = _round_up(L_de, Tq)
    n_q_tiles = L_de_pad // Tq
    # Fold batch elements per grid step (Bt must divide B) so each step carries
    # >= ~128 query rows worth of work and per-step overhead is amortized.
    max_bt = max(1, min(B, max(1, 256 // Tq)))
    Bt = 1
    for cand in range(max_bt, 0, -1):
        if B % cand == 0:
            Bt = cand
            break
    grid = (B // Bt, n_q_tiles)

    # ---- padding -----------------------------------------------------------
    de = traj_de
    if L_de_pad != L_de:
        de = jnp.pad(de, ((0, 0), (0, L_de_pad - L_de), (0, 0)))
    en = traj_en
    if Lk != L_en:
        en = jnp.pad(en, ((0, 0), (0, Lk - L_en), (0, 0)))
    # TODO(synk): for very long encoder sequences (Bt*Lk*H blocks approaching VMEM)
    # switch to an online-softmax (flash-style) inner loop over L_en tiles.

    de_spec = pl.BlockSpec((Bt, Tq, H), lambda b, q: (b, q, 0))
    en_spec = pl.BlockSpec((Bt, Lk, H), lambda b, q: (b, 0, 0))
    out_spec = pl.BlockSpec((Bt, Tq, Lk), lambda b, q: (b, q, 0))
    out_shape = jax.ShapeDtypeStruct((B, L_de_pad, Lk), jnp.float32)

    # Raise the scoped VMEM limit only when the (double-buffered) blocks need it;
    # stay well under 64 MiB so the same code fits v7x and v5e/v6e.
    blk_bytes = 2 * 4 * (Bt * Tq * H + Bt * Lk * H + Bt * Tq * Lk) + 4 * H * H
    cp_kwargs = dict(dimension_semantics=("parallel", "parallel"))
    if blk_bytes > 24 * 1024 * 1024:
        cp_kwargs["vmem_limit_bytes"] = min(int(blk_bytes * 3 // 2), 48 * 1024 * 1024)
    compiler_params = pltpu.CompilerParams(**cp_kwargs)

    if method == "general":
        w_spec = pl.BlockSpec((H, H), lambda b, q: (0, 0))
        out = pl.pallas_call(
            functools.partial(_attn_kernel_general, n_keys=L_en),
            out_shape=out_shape,
            grid=grid,
            in_specs=[de_spec, en_spec, w_spec],
            out_specs=out_spec,
            compiler_params=compiler_params,
        )(de, en, attn_weight)
    else:
        out = pl.pallas_call(
            functools.partial(_attn_kernel_dot, n_keys=L_en),
            out_shape=out_shape,
            grid=grid,
            in_specs=[de_spec, en_spec],
            out_specs=out_spec,
            compiler_params=compiler_params,
        )(de, en)

    return out[:, :L_de, :L_en]


def _reference(traj_de, traj_en, w, method):
    """Pure-JAX (f32) reference mirroring the PyTorch forward."""
    if method == "general":
        fc = traj_en @ w.T                      # nn.Linear(hidden, hidden, bias=False)
        wei = traj_de @ jnp.swapaxes(fc, -2, -1)
    else:
        wei = traj_de @ jnp.swapaxes(traj_en, -2, -1)
    return jax.nn.softmax(wei, axis=-1)


if __name__ == "__main__":
    # Small shapes consistent with the module: B=2, L_de=8, L_en=8, hidden=32.
    B, L_de, L_en, H = 2, 8, 8, 32

    key = jax.random.PRNGKey(0)
    k_de, k_en, k_w = jax.random.split(key, 3)
    traj_de = 0.5 * jax.random.normal(k_de, (B, L_de, H), dtype=jnp.float32)
    traj_en = 0.5 * jax.random.normal(k_en, (B, L_en, H), dtype=jnp.float32)
    # Deterministic init of nn.Linear(hidden, hidden, bias=False) weight.
    attn_w = jax.random.normal(k_w, (H, H), dtype=jnp.float32) * (1.0 / jnp.sqrt(H))

    # 'general' method (has the Linear layer).
    out_general = attn_forward(traj_de, traj_en, attn_w, method="general")
    jax.block_until_ready(out_general)
    ref_general = _reference(traj_de, traj_en, attn_w, "general")
    assert out_general.shape == (B, L_de, L_en)
    assert bool(jnp.all(jnp.isfinite(out_general)))
    err_g = float(jnp.max(jnp.abs(out_general - ref_general)))
    # bf16 MXU inputs (f32 accumulation, f32 softmax) -> widened tolerance vs f32 ref.
    assert err_g < 5e-2, f"general max abs err {err_g}"
    assert jnp.allclose(jnp.sum(out_general, axis=-1), 1.0, atol=5e-3)

    # 'dot' method (no parameters).
    out_dot = attn_forward(traj_de, traj_en, method="dot")
    jax.block_until_ready(out_dot)
    ref_dot = _reference(traj_de, traj_en, None, "dot")
    assert out_dot.shape == (B, L_de, L_en)
    err_d = float(jnp.max(jnp.abs(out_dot - ref_dot)))
    assert err_d < 5e-2, f"dot max abs err {err_d}"
    assert jnp.allclose(jnp.sum(out_dot, axis=-1), 1.0, atol=5e-3)

    print("KERNEL_OK")
</pallas_src>

<mosaic_0001>
module attributes {stable_mosaic.version = 11 : i64} {
  func.func @_attn_kernel_general(%arg0: i32, %arg1: i32, %arg2: memref<2x8x32xf32, #tpu.memory_space<vmem>>, %arg3: memref<2x128x32xf32, #tpu.memory_space<vmem>>, %arg4: memref<32x32xf32, #tpu.memory_space<vmem>>, %arg5: memref<2x8x128xf32, #tpu.memory_space<vmem>>) attributes {dimension_semantics = [#tpu.dimension_semantics<parallel>, #tpu.dimension_semantics<parallel>], iteration_bounds = array<i64: 1, 1>, scalar_prefetch = 0 : i64, scratch_operands = 0 : i64, tpu.core_type = #tpu.core_type<tc>, window_params = [{transform_indices = @transform_0, window_bounds = array<i64: 2, 8, 32>}, {transform_indices = @transform_1, window_bounds = array<i64: 2, 128, 32>}, {pipeline_mode = #tpu.pipeline_mode<synchronous>, transform_indices = @transform_2, window_bounds = array<i64: 32, 32>}, {transform_indices = @transform_3, window_bounds = array<i64: 2, 8, 128>}]} {
    %c0 = arith.constant 0 : index
    %c0_0 = arith.constant 0 : index
    %c0_1 = arith.constant 0 : index
    %0 = vector.load %arg2[%c0, %c0_0, %c0_1] : memref<2x8x32xf32, #tpu.memory_space<vmem>>, vector<2x8x32xf32>
    %1 = arith.truncf %0 : vector<2x8x32xf32> to vector<2x8x32xbf16>
    %c0_2 = arith.constant 0 : index
    %c0_3 = arith.constant 0 : index
    %c0_4 = arith.constant 0 : index
    %2 = vector.load %arg3[%c0_2, %c0_3, %c0_4] : memref<2x128x32xf32, #tpu.memory_space<vmem>>, vector<2x128x32xf32>
    %3 = arith.truncf %2 : vector<2x128x32xf32> to vector<2x128x32xbf16>
    %c0_5 = arith.constant 0 : index
    %c0_6 = arith.constant 0 : index
    %4 = vector.load %arg4[%c0_5, %c0_6] : memref<32x32xf32, #tpu.memory_space<vmem>>, vector<32x32xf32>
    %5 = arith.truncf %4 : vector<32x32xf32> to vector<32x32xbf16>
    %6 = vector.shape_cast %1 : vector<2x8x32xbf16> to vector<16x32xbf16>
    %cst = arith.constant dense<0.000000e+00> : vector<16x32xf32>
    %7 = tpu.matmul %6, %5, %cst {dimension_numbers = #tpu.dot_dimension_numbers<[1], [0], [0], [1], [0, 0, 1, 1], [], []>} : vector<16x32xbf16>, vector<32x32xbf16>, vector<16x32xf32> -> vector<16x32xf32>
    %8 = vector.shape_cast %7 : vector<16x32xf32> to vector<2x8x32xf32>
    %9 = arith.truncf %8 : vector<2x8x32xf32> to vector<2x8x32xbf16>
    %cst_7 = arith.constant dense<0.000000e+00> : vector<2x8x128xf32>
    %10 = tpu.matmul %9, %3, %cst_7 {dimension_numbers = #tpu.dot_dimension_numbers<[2], [2], [1], [1], [0, 0, 0, 1, 1, 1], [0], [0]>} : vector<2x8x32xbf16>, vector<2x128x32xbf16>, vector<2x8x128xf32> -> vector<2x8x128xf32>
    %11 = tpu.iota {dimensions = array<i32: 2>} : vector<2x8x128xi32>
    %c8_i32 = arith.constant 8 : i32
    %12 = vector.broadcast %c8_i32 : i32 to vector<2x8x128xi32>
    %13 = arith.cmpi slt, %11, %12 : vector<2x8x128xi32>
    %cst_8 = arith.constant -1.000000e+30 : f32
    %14 = vector.broadcast %cst_8 : f32 to vector<2x8x128xf32>
    %15 = arith.select %13, %10, %14 : vector<2x8x128xi1>, vector<2x8x128xf32>
    %cst_9 = arith.constant dense<0xFF800000> : vector<2x8xf32>
    %16 = vector.multi_reduction <maximumf>, %15, %cst_9 [2] : vector<2x8x128xf32> to vector<2x8xf32>
    %17 = vector.shape_cast %16 : vector<2x8xf32> to vector<2x8x1xf32>
    %18 = vector.broadcast %17 : vector<2x8x1xf32> to vector<2x8x128xf32>
    %19 = arith.subf %15, %18 : vector<2x8x128xf32>
    %20 = math.exp %19 : vector<2x8x128xf32>
    %cst_10 = arith.constant dense<0.000000e+00> : vector<2x8xf32>
    %21 = vector.multi_reduction <add>, %20, %cst_10 [2] : vector<2x8x128xf32> to vector<2x8xf32>
    %22 = vector.shape_cast %21 : vector<2x8xf32> to vector<2x8x1xf32>
    %23 = tpu.reciprocal %22 {approx = true} : vector<2x8x1xf32> -> vector<2x8x1xf32>
    %24 = vector.broadcast %23 : vector<2x8x1xf32> to vector<2x8x128xf32>
    %25 = arith.mulf %20, %24 : vector<2x8x128xf32>
    %c0_11 = arith.constant 0 : index
    %c0_12 = arith.constant 0 : index
    %c0_13 = arith.constant 0 : index
    %26 = vector.load %arg5[%c0_11, %c0_12, %c0_13] : memref<2x8x128xf32, #tpu.memory_space<vmem>>, vector<2x8x128xf32>
    tpu.vector_store %arg5[%c0_11, %c0_12, %c0_13], %25 {strides = array<i32>} : memref<2x8x128xf32, #tpu.memory_space<vmem>>, vector<2x8x128xf32>,
    return
  }
  func.func @transform_0(%arg0: i32, %arg1: i32) -> (i32, i32, i32) {
    %c0_i32 = arith.constant 0 : i32
    %c0_i32_0 = arith.constant 0 : i32
    return %arg0, %arg1, %c0_i32 : i32, i32, i32
  }
  func.func @transform_1(%arg0: i32, %arg1: i32) -> (i32, i32, i32) {
    %c0_i32 = arith.constant 0 : i32
    %c0_i32_0 = arith.constant 0 : i32
    %c0_i32_1 = arith.constant 0 : i32
    return %arg0, %c0_i32, %c0_i32_0 : i32, i32, i32
  }
  func.func @transform_2(%arg0: i32, %arg1: i32) -> (i32, i32) {
    %c0_i32 = arith.constant 0 : i32
    %c0_i32_0 = arith.constant 0 : i32
    %c0_i32_1 = arith.constant 0 : i32
    return %c0_i32, %c0_i32_0 : i32, i32
  }
  func.func @transform_3(%arg0: i32, %arg1: i32) -> (i32, i32, i32) {
    %c0_i32 = arith.constant 0 : i32
    %c0_i32_0 = arith.constant 0 : i32
    return %arg0, %arg1, %c0_i32 : i32, i32, i32
  }
}

</mosaic_0001>

<llo_original>
// kernel: attn_forward.1
$region0: #{attn_forward.1}
  #allocation0 [shape = 'u32[]', space=smem, size = 0x4, offset = 0x4, fixed_abs, tag = 'smem constant byte address 0x4 - core index']
  #allocation1 [shape = 'u32[144,128]{1,0:T(1,128)}', space=vmem, size = 0x12000, scoped, tag = 'internal scratch']
  %s0 = inlined_call_operand.vmem [shape: f32[2,8,32], index: 0, kind: input, shape index: {}]
  %s1 = inlined_call_operand.vmem [shape: f32[2,128,32], index: 1, kind: input, shape index: {}]
  %s2 = inlined_call_operand.vmem [shape: f32[32,32], index: 2, kind: input, shape index: {}]
  %s3 = inlined_call_operand.hbm [shape: f32[2,8,128], index: 3, kind: output, shape index: {}]
  %s4 = sld [smem:[#allocation0]]
  $region22: #{attn_forward.1} parent=0
    _
  %s6 = ssub.s32 1, %s4
  %s7 = scalar_select 0, %s6, %s4
  $region1: #{attn_forward.1} parent=0
    #allocation2 [shape = 'u8[8192]{0}', space=vmem, size = 0x2000, scoped, tag = 'output window, operand 0, single buffered']
    #allocation3 [shape = 's32[1]{0}', space=sflag, size = 0x4, scoped, tag = 'scoped memory for attn_forward.1']
    %8 = vsyncpa [#allocation3], 0
    // Predicated region
    $region2: #{attn_forward.1} parent=1 // pred_check
      _
    $region3: #{attn_forward.1} parent=1 // pred_check_branch
      %10 = sbr.rel (0) target = $region5
    $region4: #{attn_forward.1} parent=1 // pred_region
      _
    $region5: #{attn_forward.1} parent=1 // pred_fallthru
      _
    // Predicated region
    $region6: #{attn_forward.1} parent=1 // pred_check
      _
    $region7: #{attn_forward.1} parent=1 // pred_check_branch
      %12 = sbr.rel (0) target = $region9
    $region8: #{attn_forward.1} parent=1 // pred_region
      _
    $region9: #{attn_forward.1} parent=1 // pred_fallthru
      _
    // Predicated region
    $region10: #{attn_forward.1} parent=1 // pred_check
      _
    $region11: #{attn_forward.1} parent=1 // pred_check_branch
      %14 = sbr.rel (0) target = $region13
    $region12: #{attn_forward.1} parent=1 // pred_region
      _
    $region13: #{attn_forward.1} parent=1 // pred_fallthru
      _
    %v16 = vld [vmem:[%s0] sm:$0xff]
    %v17 = vld [vmem:[%s0 + $0x8] sm:$0xff]
    %v18 = vpack.c.bf16 %v16, %v16
    %v19 = vpack.c.bf16 %v17, %v17
    %v20 = vld [vmem:[%s1] sm:$0xff]
    %v21 = vld [vmem:[%s1 + $0x8] sm:$0xff]
    %v22 = vld [vmem:[%s1 + $0x10] sm:$0xff]
    %v23 = vld [vmem:[%s1 + $0x18] sm:$0xff]
    %v24 = vld [vmem:[%s1 + $0x20] sm:$0xff]
    %v25 = vld [vmem:[%s1 + $0x28] sm:$0xff]
    %v26 = vld [vmem:[%s1 + $0x30] sm:$0xff]
    %v27 = vld [vmem:[%s1 + $0x38] sm:$0xff]
    %v28 = vld [vmem:[%s1 + $0x40] sm:$0xff]
    %v29 = vld [vmem:[%s1 + $0x48] sm:$0xff]
    %v30 = vld [vmem:[%s1 + $0x50] sm:$0xff]
    %v31 = vld [vmem:[%s1 + $0x58] sm:$0xff]
    %v32 = vld [vmem:[%s1 + $0x60] sm:$0xff]
    %v33 = vld [vmem:[%s1 + $0x68] sm:$0xff]
    %v34 = vld [vmem:[%s1 + $0x70] sm:$0xff]
    %v35 = vld [vmem:[%s1 + $0x78] sm:$0xff]
    %v36 = vld [vmem:[%s1 + $0x80] sm:$0xff]
    %v37 = vld [vmem:[%s1 + $0x88] sm:$0xff]
    %v38 = vld [vmem:[%s1 + $0x90] sm:$0xff]
    %v39 = vld [vmem:[%s1 + $0x98] sm:$0xff]
    %v40 = vld [vmem:[%s1 + $0xa0] sm:$0xff]
    %v41 = vld [vmem:[%s1 + $0xa8] sm:$0xff]
    %v42 = vld [vmem:[%s1 + $0xb0] sm:$0xff]
    %v43 = vld [vmem:[%s1 + $0xb8] sm:$0xff]
    %v44 = vld [vmem:[%s1 + $0xc0] sm:$0xff]
    %v45 = vld [vmem:[%s1 + $0xc8] sm:$0xff]
    %v46 = vld [vmem:[%s1 + $0xd0] sm:$0xff]
    %v47 = vld [vmem:[%s1 + $0xd8] sm:$0xff]
    %v48 = vld [vmem:[%s1 + $0xe0] sm:$0xff]
    %v49 = vld [vmem:[%s1 + $0xe8] sm:$0xff]
    %v50 = vld [vmem:[%s1 + $0xf0] sm:$0xff]
    %v51 = vld [vmem:[%s1 + $0xf8] sm:$0xff]
    %v52 = vpack.c.bf16 %v21, %v20
    %v53 = vpack.c.bf16 %v23, %v22
    %v54 = vpack.c.bf16 %v25, %v24
    %v55 = vpack.c.bf16 %v27, %v26
    %v56 = vpack.c.bf16 %v29, %v28
    %v57 = vpack.c.bf16 %v31, %v30
    %v58 = vpack.c.bf16 %v33, %v32
    %v59 = vpack.c.bf16 %v35, %v34
    %v60 = vpack.c.bf16 %v37, %v36
    %v61 = vpack.c.bf16 %v39, %v38
    %v62 = vpack.c.bf16 %v41, %v40
    %v63 = vpack.c.bf16 %v43, %v42
    %v64 = vpack.c.bf16 %v45, %v44
    %v65 = vpack.c.bf16 %v47, %v46
    %v66 = vpack.c.bf16 %v49, %v48
    %v67 = vpack.c.bf16 %v51, %v50
    %v68 = vld [vmem:[%s2] sm:$0xff]
    %v69 = vld [vmem:[%s2 + $0x8] sm:$0xff]
    %v70 = vld [vmem:[%s2 + $0x10] sm:$0xff]
    %v71 = vld [vmem:[%s2 + $0x18] sm:$0xff]
    %v72 = vpack.c.bf16 %v69, %v68
    %v73 = vpack.c.bf16 %v71, %v70
    %v76 = vunpack.c.l.b16 %v18
    %v77 = vunpack.c.l.b16 %v19
    %v78 = vpack.c.b16 %v77, %v76
    %vm79 = vcmask 261120
    %v81 = vsel %vm79, %v78, 0
    %83 = vmatprep.subr.bf16.mxu0 0
    %84 = vmatpush1.bf16.msra.mxu0 0
    %85 = vmatprep.subr.bf16.mxu0 0
    %86 = vmatpush1.bf16.msra.mxu0 0
    %87 = vmatprep.subr.bf16.mxu0 0
    %88 = vmatpush1.bf16.msra.mxu0 0
    %89 = vmatprep.subr.bf16.mxu0 0
    %90 = vmatpush1.bf16.msra.mxu0 0
    %91 = vmatprep.subr.bf16.mxu0 0
    %92 = vmatpush1.bf16.msra.mxu0 0
    %93 = vmatprep.subr.bf16.mxu0 0
    %94 = vmatpush1.bf16.msra.mxu0 0
    %95 = vmatprep.subr.bf16.mxu0 0
    %96 = vmatpush1.bf16.msra.mxu0 %v73
    %97 = vmatprep.subr.bf16.mxu0 0
    %98 = vmatpush1.bf16.msra.mxu0 %v72
    %99 = vmatprep.subr.bf16.mxu0 0
    %100 = vmatpush2.bf16.msra.mxu0 0
    %101 = vmatprep.subr.bf16.mxu0 0
    %102 = vmatpush2.bf16.msra.mxu0 0
    %103 = vmatprep.subr.bf16.mxu0 0
    %104 = vmatpush2.bf16.msra.mxu0 0
    %105 = vmatprep.subr.bf16.mxu0 0
    %106 = vmatpush2.bf16.msra.mxu0 0
    %107 = vmatprep.subr.bf16.mxu0 0
    %108 = vmatpush2.bf16.msra.mxu0 0
    %109 = vmatprep.subr.bf16.mxu0 0
    %110 = vmatpush2.bf16.msra.mxu0 0
    %111 = vmatprep.subr.bf16.mxu0 0
    %112 = vmatpush2.bf16.msra.mxu0 0
    %113 = vmatprep.subr.bf16.mxu0 0
    %114 = vmatpush2.bf16.msra.mxu0 0
    %115 = vmatprep.mubr.bf16.mxu0 0
    %116 = vmatmul.mubr.bf16.gmra.mxu0 %v81
    %v117 = vpop.f32.mrf.mxu0
    %v118 = vadd.f32 0.0, %v117
    %v119 = vpop.f32.mrf.mxu0
    %v120 = vpop.f32.mrf.mxu0
    %v121 = vadd.f32 0.0, %v120
    %v122 = vpop.f32.mrf.mxu0
    %123 = vdwg.mxu0
    %v124 = vpack.c.bf16 %v118, %v118
    %v125 = vpack.c.bf16 %v121, %v121
    %v127 = vsel %vm79, %v124, 0
    %v130 = vsel %vm79, %v52, 0
    %v133 = vsel %vm79, %v53, 0
    %v136 = vsel %vm79, %v54, 0
    %v139 = vsel %vm79, %v55, 0
    %v142 = vsel %vm79, %v56, 0
    %v145 = vsel %vm79, %v57, 0
    %v148 = vsel %vm79, %v58, 0
    %v151 = vsel %vm79, %v59, 0
    %153 = vmatprep.subr.bf16.mxu0 0
    %154 = vmatpush1.bf16.xpose.msra.mxu0 %v151
    %155 = vmatprep.subr.bf16.mxu0 0
    %156 = vmatpush1.bf16.xpose.msra.mxu0 %v148
    %157 = vmatprep.subr.bf16.mxu0 0
    %158 = vmatpush1.bf16.xpose.msra.mxu0 %v145
    %159 = vmatprep.subr.bf16.mxu0 0
    %160 = vmatpush1.bf16.xpose.msra.mxu0 %v142
    %161 = vmatprep.subr.bf16.mxu0 0
    %162 = vmatpush1.bf16.xpose.msra.mxu0 %v139
    %163 = vmatprep.subr.bf16.mxu0 0
    %164 = vmatpush1.bf16.xpose.msra.mxu0 %v136
    %165 = vmatprep.subr.bf16.mxu0 0
    %166 = vmatpush1.bf16.xpose.msra.mxu0 %v133
    %167 = vmatprep.subr.bf16.mxu0 0
    %168 = vmatpush1.bf16.xpose.msra.mxu0 %v130
    %169 = vmatprep.subr.bf16.mxu0 0
    %170 = vmatpush2.bf16.xpose.msra.mxu0 0
    %171 = vmatprep.subr.bf16.mxu0 0
    %172 = vmatpush2.bf16.xpose.msra.mxu0 0
    %173 = vmatprep.subr.bf16.mxu0 0
    %174 = vmatpush2.bf16.xpose.msra.mxu0 0
    %175 = vmatprep.subr.bf16.mxu0 0
    %176 = vmatpush2.bf16.xpose.msra.mxu0 0
    %177 = vmatprep.subr.bf16.mxu0 0
    %178 = vmatpush2.bf16.xpose.msra.mxu0 0
    %179 = vmatprep.subr.bf16.mxu0 0
    %180 = vmatpush2.bf16.xpose.msra.mxu0 0
    %181 = vmatprep.subr.bf16.mxu0 0
    %182 = vmatpush2.bf16.xpose.msra.mxu0 0
    %183 = vmatprep.subr.bf16.mxu0 0
    %184 = vmatpush2.bf16.xpose.msra.mxu0 0
    %185 = vmatprep.mubr.bf16.mxu0 0
    %186 = vmatmul.mubr.bf16.gmra.mxu0 %v127
    %v187 = vpop.f32.mrf.mxu0
    %v188 = vadd.f32 0.0, %v187
    %v189 = vpop.f32.mrf.mxu0
    %v190 = vpop.f32.mrf.mxu0
    %v191 = vpop.f32.mrf.mxu0
    %192 = vdwg.mxu0
    %v194 = vsel %vm79, %v125, 0
    %v197 = vsel %vm79, %v60, 0
    %v200 = vsel %vm79, %v61, 0
    %v203 = vsel %vm79, %v62, 0
    %v206 = vsel %vm79, %v63, 0
    %v209 = vsel %vm79, %v64, 0
    %v212 = vsel %vm79, %v65, 0
    %v215 = vsel %vm79, %v66, 0
    %v218 = vsel %vm79, %v67, 0
    %220 = vmatprep.subr.bf16.mxu0 0
    %221 = vmatpush1.bf16.xpose.msra.mxu0 %v218
    %222 = vmatprep.subr.bf16.mxu0 0
    %223 = vmatpush1.bf16.xpose.msra.mxu0 %v215
    %224 = vmatprep.subr.bf16.mxu0 0
    %225 = vmatpush1.bf16.xpose.msra.mxu0 %v212
    %226 = vmatprep.subr.bf16.mxu0 0
    %227 = vmatpush1.bf16.xpose.msra.mxu0 %v209
    %228 = vmatprep.subr.bf16.mxu0 0
    %229 = vmatpush1.bf16.xpose.msra.mxu0 %v206
    %230 = vmatprep.subr.bf16.mxu0 0
    %231 = vmatpush1.bf16.xpose.msra.mxu0 %v203
    %232 = vmatprep.subr.bf16.mxu0 0
    %233 = vmatpush1.bf16.xpose.msra.mxu0 %v200
    %234 = vmatprep.subr.bf16.mxu0 0
    %235 = vmatpush1.bf16.xpose.msra.mxu0 %v197
    %236 = vmatprep.subr.bf16.mxu0 0
    %237 = vmatpush2.bf16.xpose.msra.mxu0 0
    %238 = vmatprep.subr.bf16.mxu0 0
    %239 = vmatpush2.bf16.xpose.msra.mxu0 0
    %240 = vmatprep.subr.bf16.mxu0 0
    %241 = vmatpush2.bf16.xpose.msra.mxu0 0
    %242 = vmatprep.subr.bf16.mxu0 0
    %243 = vmatpush2.bf16.xpose.msra.mxu0 0
    %244 = vmatprep.subr.bf16.mxu0 0
    %245 = vmatpush2.bf16.xpose.msra.mxu0 0
    %246 = vmatprep.subr.bf16.mxu0 0
    %247 = vmatpush2.bf16.xpose.msra.mxu0 0
    %248 = vmatprep.subr.bf16.mxu0 0
    %249 = vmatpush2.bf16.xpose.msra.mxu0 0
    %250 = vmatprep.subr.bf16.mxu0 0
    %251 = vmatpush2.bf16.xpose.msra.mxu0 0
    %252 = vmatprep.mubr.bf16.mxu0 0
    %253 = vmatmul.mubr.bf16.gmra.mxu0 %v194
    %v254 = vpop.f32.mrf.mxu0
    %v255 = vadd.f32 0.0, %v254
    %v256 = vpop.f32.mrf.mxu0
    %v257 = vpop.f32.mrf.mxu0
    %v258 = vpop.f32.mrf.mxu0
    %259 = vdwg.mxu0
    %v260 = vlaneseq
    %v261 = vand.u32 %v260, 127
    %vm262 = vcmp.lt.s32.totalorder %v261, 8
    %v263 = vsel %vm262, %v188, -1e+30
    %v264 = vsel %vm262, %v255, -1e+30
    %265 = vmax.xlane.f32.xlu0 %v263
    %v266 = vpop.xlane.xlu0 %265
    %267 = vmax.xlane.f32.xlu0 %v264
    %v268 = vpop.xlane.xlu0 %267
    %v269 = vsub.f32 %v263, %v266
    %v270 = vsub.f32 %v264, %v268
    %v271 = vmul.f32 %v269, 1.442695
    %v272 = vpow.pop %v271
    %v273 = vmul.f32 %v270, 1.442695
    %v274 = vpow.pop %v273
    %275 = vadd.xlane.f32.xlu0 %v272
    %v276 = vpop.xlane.xlu0 %275
    %277 = vadd.xlane.f32.xlu0 %v274
    %v278 = vpop.xlane.xlu0 %277
    %v279 = vrcp.pop %v276
    %v280 = vrcp.pop %v278
    %v281 = vmul.f32 %v272, %v279
    %v282 = vmul.f32 %v274, %v280
    %283 = vst [vmem:[#allocation2] sm:$0xff] %v281
    %284 = vst [vmem:[#allocation2 + $0x8] sm:$0xff] %v282
    // Predicated region
    $region14: #{attn_forward.1} parent=1 // pred_check
      _
    $region15: #{attn_forward.1} parent=1 // pred_check_branch
      %286 = sbr.rel (0) target = $region17
    $region16: #{attn_forward.1} parent=1 // pred_region
      %s288 = ssub.s32 256, 256
      %289 = vsyncadd [#allocation3], %s288
      %s290 = sshll.u32 [#allocation2], 4
      %s291 = int_to_ptr.vmem [resolvable:$true] %s290
      %296 = dma.vmem_to_hbm [thread:$0]  %s291, 256, %s3, [#allocation3], 128, 128, 8
    $region17: #{attn_forward.1} parent=1 // pred_fallthru
      _
    // Predicated region
    $region18: #{attn_forward.1} parent=1 // pred_check
      _
    $region19: #{attn_forward.1} parent=1 // pred_check_branch
      %298 = sbr.rel (0) target = $region21
    $region20: #{attn_forward.1} parent=1 // pred_region
      %299 = dma.done [#allocation3], 256
    $region21: #{attn_forward.1} parent=1 // pred_fallthru
      _
    %300 = vsyncpa [#allocation3], 1

</llo_original>
